<compile_context>
chip_gen: v6e
topology: v6e:2x2x1
jax: 0.10.0
libtpu: 0.0.40
codegen_flags: <defaults>
</compile_context>

<pallas_src>
import functools
import math

import jax
import jax.numpy as jnp
from jax.experimental import pallas as pl
from jax.experimental.pallas import tpu as pltpu

BN_EPS = 1e-5
_VMEM_LIMIT_BYTES = 32 * 1024 * 1024      # explicit scoped-VMEM cap (safe on v5e/v6e/v7x)
_ROW_TILE_TARGET = 512                    # >=512 rows hits ~85% HBM roofline when tiled
_ATTN_VMEM_BUDGET = 8 * 1024 * 1024       # per-step budget for the attention block


# ----------------------------------------------------------------------------
# Shared in-kernel helpers (operate on values, not refs)
# ----------------------------------------------------------------------------
def _lin1(x, w1, b1):
    # [R, 3] @ [3, DH] done as 3 broadcast FMAs on the VPU: a K=3 matmul would
    # use 3/256 of the MXU contraction dim and 3/128 lanes of the operand.
    return (b1
            + x[:, 0:1] * w1[0:1, :]
            + x[:, 1:2] * w1[1:2, :]
            + x[:, 2:3] * w1[2:3, :])


def _bn_apply(h, stats, inv_count, gamma, beta):
    # stats[0] = sum(h), stats[1] = sum(h*h) over the whole (B*N) batch.
    mean = stats[0:1, :] * inv_count
    var = stats[1:2, :] * inv_count - mean * mean     # biased (training-mode) var
    return (h - mean) * jax.lax.rsqrt(var + BN_EPS) * gamma + beta


def _moments(h):
    return jnp.concatenate(
        [jnp.sum(h, axis=0, keepdims=True),
         jnp.sum(h * h, axis=0, keepdims=True)], axis=0)


# ----------------------------------------------------------------------------
# Kernel 1: BN1 statistics (row-tiled accumulator)
# ----------------------------------------------------------------------------
def stats1_kernel(xyz_ref, w1_ref, b1_ref, s1_ref):
    @pl.when(pl.program_id(0) == 0)
    def _init():
        s1_ref[...] = jnp.zeros_like(s1_ref)

    h1 = _lin1(xyz_ref[...], w1_ref[...], b1_ref[...])         # [R, DH] f32
    s1_ref[...] += _moments(h1)


# ----------------------------------------------------------------------------
# Kernel 2: BN2 statistics (row-tiled accumulator; recompute layer 1)
# ----------------------------------------------------------------------------
def stats2_kernel(xyz_ref, s1_ref, w1_ref, b1_ref, g1_ref, be1_ref,
                  w2_ref, b2_ref, s2_ref, *, inv_count, mxu_dtype):
    @pl.when(pl.program_id(0) == 0)
    def _init():
        s2_ref[...] = jnp.zeros_like(s2_ref)

    h1 = _lin1(xyz_ref[...], w1_ref[...], b1_ref[...])
    h1r = jnp.maximum(
        _bn_apply(h1, s1_ref[...], inv_count, g1_ref[...], be1_ref[...]), 0.0)
    # MXU matmul with bf16 operands (f32 accumulation); no-op casts in f32 mode.
    h2 = jnp.dot(h1r.astype(mxu_dtype), w2_ref[...].astype(mxu_dtype),
                 preferred_element_type=jnp.float32) + b2_ref[...]
    s2_ref[...] += _moments(h2)


# ----------------------------------------------------------------------------
# Kernel 3: fused point-net apply + feature add + attention (batch-tiled)
# ----------------------------------------------------------------------------
def attn_kernel(xyz_ref, feat_ref, s1_ref, s2_ref,
                w1_ref, b1_ref, g1_ref, be1_ref,
                w2_ref, b2_ref, g2_ref, be2_ref,
                wq_ref, wk_ref, wv_ref, out_ref,
                *, inv_count, inv_sqrt_d, mxu_dtype):
    bt, n, d = out_ref.shape

    # --- recompute point-net for this slab (pos_enc never hits HBM) ---------
    x3 = xyz_ref[...].reshape(bt * n, 3)
    h1 = _lin1(x3, w1_ref[...], b1_ref[...])
    h1r = jnp.maximum(
        _bn_apply(h1, s1_ref[...], inv_count, g1_ref[...], be1_ref[...]), 0.0)
    h2 = jnp.dot(h1r.astype(mxu_dtype), w2_ref[...].astype(mxu_dtype),
                 preferred_element_type=jnp.float32) + b2_ref[...]
    pos = jnp.maximum(
        _bn_apply(h2, s2_ref[...], inv_count, g2_ref[...], be2_ref[...]), 0.0)

    # --- attention ----------------------------------------------------------
    x = pos + feat_ref[...].reshape(bt * n, d)                  # [Bt*N, D] f32
    xc = x.astype(mxu_dtype)
    wq = wq_ref[...].astype(mxu_dtype)
    wk = wk_ref[...].astype(mxu_dtype)
    wv = wv_ref[...].astype(mxu_dtype)

    # Scale q (N*D elems) instead of the [N,N] score matrix.
    q = (jnp.dot(xc, wq, preferred_element_type=jnp.float32)
         * inv_sqrt_d).reshape(bt, n, d)
    k = jnp.dot(xc, wk, preferred_element_type=jnp.float32).reshape(bt, n, d)
    v = jnp.dot(xc, wv, preferred_element_type=jnp.float32).reshape(bt, n, d)

    # q @ k^T expressed as a last-axis contraction -> no materialized k.T.
    s = jnp.einsum("bnd,bmd->bnm", q.astype(mxu_dtype), k.astype(mxu_dtype),
                   preferred_element_type=jnp.float32)

    # Numerically stable softmax in f32; denominator via EUP approx reciprocal.
    s = s - jnp.max(s, axis=-1, keepdims=True)
    e = jnp.exp(s)
    p = e * pl.reciprocal(jnp.sum(e, axis=-1, keepdims=True), approx=True)

    # TODO(synk): for very large N, switch this to flash-style KV tiling with an
    # online softmax instead of the full [N, N] score tile (v7x 64 MiB VMEM).
    out = jnp.einsum("bnm,bmd->bnd", p.astype(mxu_dtype), v.astype(mxu_dtype),
                     preferred_element_type=jnp.float32)
    out_ref[...] = out.astype(out_ref.dtype)


# ----------------------------------------------------------------------------
# Tile pickers
# ----------------------------------------------------------------------------
def _pick_row_tile(total, target=_ROW_TILE_TARGET):
    """Largest multiple-of-8 divisor of `total` that is <= target (else total)."""
    if total <= target:
        return total
    for t in range(min(target, total), 7, -1):
        if total % t == 0 and t % 8 == 0:
            return t
    return total


def _pick_batch_tile(b, n, d, dh, budget_bytes=_ATTN_VMEM_BUDGET):
    """Largest divisor of B whose per-step working set fits the VMEM budget."""
    per_b = 4 * (n * 3 + n * dh + 9 * n * d + 3 * n * n)    # rough f32 footprint
    bt = max(1, min(b, budget_bytes // max(per_b, 1)))
    while b % bt:
        bt -= 1
    return bt


# ----------------------------------------------------------------------------
# Wrapper
# ----------------------------------------------------------------------------
def transformer_block(xyz, features, params, *, mxu_dtype=jnp.bfloat16):
    """mxu_dtype=jnp.bfloat16 feeds the MXU bf16 operands (f32 accumulation,
    f32 BN/softmax). Pass jnp.float32 for exact module-precision semantics."""
    B, N, _ = xyz.shape
    D = features.shape[-1]
    DH = params["w1"].shape[-1]
    BN = B * N
    inv_count = 1.0 / float(BN)

    xyz_flat = xyz.reshape(BN, 3)
    row_tile = _pick_row_tile(BN)
    n_row_tiles = BN // row_tile

    cp_arb = pltpu.CompilerParams(dimension_semantics=("arbitrary",),
                                  vmem_limit_bytes=_VMEM_LIMIT_BYTES)
    cp_par = pltpu.CompilerParams(dimension_semantics=("parallel",),
                                  vmem_limit_bytes=_VMEM_LIMIT_BYTES)

    rmap = lambda i: (i, 0)        # row-tiled operand
    cmap = lambda i: (0, 0)        # constant (weights / stats) operand

    # ---- pass 1: BN1 statistics --------------------------------------------
    s1 = pl.pallas_call(
        stats1_kernel,
        out_shape=jax.ShapeDtypeStruct((2, DH), jnp.float32),
        grid=(n_row_tiles,),
        in_specs=[pl.BlockSpec((row_tile, 3), rmap),
                  pl.BlockSpec((3, DH), cmap),
                  pl.BlockSpec((1, DH), cmap)],
        out_specs=pl.BlockSpec((2, DH), cmap),
        compiler_params=cp_arb,
    )(xyz_flat, params["w1"], params["b1"])

    # ---- pass 2: BN2 statistics --------------------------------------------
    s2 = pl.pallas_call(
        functools.partial(stats2_kernel, inv_count=inv_count, mxu_dtype=mxu_dtype),
        out_shape=jax.ShapeDtypeStruct((2, D), jnp.float32),
        grid=(n_row_tiles,),
        in_specs=[pl.BlockSpec((row_tile, 3), rmap),
                  pl.BlockSpec((2, DH), cmap),
                  pl.BlockSpec((3, DH), cmap),
                  pl.BlockSpec((1, DH), cmap),
                  pl.BlockSpec((1, DH), cmap),
                  pl.BlockSpec((1, DH), cmap),
                  pl.BlockSpec((DH, D), cmap),
                  pl.BlockSpec((1, D), cmap)],
        out_specs=pl.BlockSpec((2, D), cmap),
        compiler_params=cp_arb,
    )(xyz_flat, s1, params["w1"], params["b1"], params["g1"], params["be1"],
      params["w2"], params["b2"])

    # ---- pass 3: fused point-net apply + attention --------------------------
    Bt = _pick_batch_tile(B, N, D, DH)
    bmap = lambda b: (b, 0, 0)
    cmap3 = lambda b: (0, 0)
    out = pl.pallas_call(
        functools.partial(attn_kernel, inv_count=inv_count,
                          inv_sqrt_d=1.0 / math.sqrt(D), mxu_dtype=mxu_dtype),
        out_shape=jax.ShapeDtypeStruct((B, N, D), jnp.float32),
        grid=(B // Bt,),
        in_specs=[pl.BlockSpec((Bt, N, 3), bmap),
                  pl.BlockSpec((Bt, N, D), bmap),
                  pl.BlockSpec((2, DH), cmap3),
                  pl.BlockSpec((2, D), cmap3),
                  pl.BlockSpec((3, DH), cmap3),
                  pl.BlockSpec((1, DH), cmap3),
                  pl.BlockSpec((1, DH), cmap3),
                  pl.BlockSpec((1, DH), cmap3),
                  pl.BlockSpec((DH, D), cmap3),
                  pl.BlockSpec((1, D), cmap3),
                  pl.BlockSpec((1, D), cmap3),
                  pl.BlockSpec((1, D), cmap3),
                  pl.BlockSpec((D, D), cmap3),
                  pl.BlockSpec((D, D), cmap3),
                  pl.BlockSpec((D, D), cmap3)],
        out_specs=pl.BlockSpec((Bt, N, D), bmap),
        compiler_params=cp_par,
    )(xyz, features, s1, s2,
      params["w1"], params["b1"], params["g1"], params["be1"],
      params["w2"], params["b2"], params["g2"], params["be2"],
      params["wq"], params["wk"], params["wv"])
    return out


# ----------------------------------------------------------------------------
# Pure-JAX reference (mxu_dtype=float32 == exact PyTorch module semantics;
# mxu_dtype=bfloat16 mirrors the kernel's MXU precision policy).
# ----------------------------------------------------------------------------
def reference(xyz, features, params, mxu_dtype=jnp.float32):
    B, N, _ = xyz.shape
    D = features.shape[-1]
    x = xyz.reshape(B * N, 3)

    h1 = x @ params["w1"] + params["b1"]
    m1 = jnp.mean(h1, 0, keepdims=True)
    v1 = jnp.mean(h1 * h1, 0, keepdims=True) - m1 * m1
    h1r = jnp.maximum(
        (h1 - m1) * jax.lax.rsqrt(v1 + BN_EPS) * params["g1"] + params["be1"], 0.0)

    h2 = jnp.dot(h1r.astype(mxu_dtype), params["w2"].astype(mxu_dtype),
                 preferred_element_type=jnp.float32) + params["b2"]
    m2 = jnp.mean(h2, 0, keepdims=True)
    v2 = jnp.mean(h2 * h2, 0, keepdims=True) - m2 * m2
    pos = jnp.maximum(
        (h2 - m2) * jax.lax.rsqrt(v2 + BN_EPS) * params["g2"] + params["be2"], 0.0)

    nf = pos.reshape(B, N, D) + features
    nfc = nf.astype(mxu_dtype)
    q = jnp.einsum("bnd,de->bne", nfc, params["wq"].astype(mxu_dtype),
                   preferred_element_type=jnp.float32) * (1.0 / math.sqrt(D))
    k = jnp.einsum("bnd,de->bne", nfc, params["wk"].astype(mxu_dtype),
                   preferred_element_type=jnp.float32)
    v = jnp.einsum("bnd,de->bne", nfc, params["wv"].astype(mxu_dtype),
                   preferred_element_type=jnp.float32)
    s = jnp.einsum("bnd,bmd->bnm", q.astype(mxu_dtype), k.astype(mxu_dtype),
                   preferred_element_type=jnp.float32)
    w = jax.nn.softmax(s, axis=-1)
    return jnp.einsum("bnm,bmd->bnd", w.astype(mxu_dtype), v.astype(mxu_dtype),
                      preferred_element_type=jnp.float32)


if __name__ == "__main__":
    B, N, D = 2, 16, 32
    DH = D // 2

    key = jax.random.PRNGKey(0)
    keys = jax.random.split(key, 8)

    # Deterministic synthetic parameters (shapes implied by __init__, d_model=D).
    params = {
        "w1": 0.2 * jax.random.normal(keys[0], (3, DH), jnp.float32),
        "b1": 0.05 * jax.random.normal(keys[1], (1, DH), jnp.float32),
        "g1": jnp.ones((1, DH), jnp.float32),
        "be1": jnp.zeros((1, DH), jnp.float32),
        "w2": 0.2 * jax.random.normal(keys[2], (DH, D), jnp.float32),
        "b2": 0.05 * jax.random.normal(keys[3], (1, D), jnp.float32),
        "g2": jnp.ones((1, D), jnp.float32),
        "be2": jnp.zeros((1, D), jnp.float32),
        "wq": 0.2 * jax.random.normal(keys[4], (D, D), jnp.float32),
        "wk": 0.2 * jax.random.normal(keys[5], (D, D), jnp.float32),
        "wv": 0.2 * jax.random.normal(keys[6], (D, D), jnp.float32),
    }

    xk, fk = jax.random.split(keys[7])
    xyz = jax.random.normal(xk, (B, N, 3), jnp.float32)
    features = jax.random.normal(fk, (B, N, D), jnp.float32)

    # Fast path (default): bf16 MXU operands, f32 accumulation/BN/softmax.
    out_fast = jax.block_until_ready(transformer_block(xyz, features, params))
    ref_fast = reference(xyz, features, params, mxu_dtype=jnp.bfloat16)
    assert out_fast.shape == (B, N, D)
    assert jnp.allclose(out_fast, ref_fast, atol=1e-2, rtol=1e-2), "bf16 path mismatch"

    # Exact-precision path: matches the PyTorch module's f32 forward semantics.
    out_f32 = jax.block_until_ready(
        transformer_block(xyz, features, params, mxu_dtype=jnp.float32))
    ref_f32 = reference(xyz, features, params, mxu_dtype=jnp.float32)
    assert jnp.allclose(out_f32, ref_f32, atol=5e-3, rtol=5e-3), "f32 path mismatch"

    print("KERNEL_OK")
</pallas_src>

<mosaic_0001>
module attributes {stable_mosaic.version = 11 : i64} {
  func.func @stats1_kernel(%arg0: i32, %arg1: memref<32x3xf32, #tpu.memory_space<vmem>>, %arg2: memref<3x16xf32, #tpu.memory_space<vmem>>, %arg3: memref<1x16xf32, #tpu.memory_space<vmem>>, %arg4: memref<2x16xf32, #tpu.memory_space<vmem>>) attributes {dimension_semantics = [#tpu.dimension_semantics<arbitrary>], iteration_bounds = array<i64: 1>, scalar_prefetch = 0 : i64, scratch_operands = 0 : i64, tpu.core_type = #tpu.core_type<tc>, window_params = [{transform_indices = @transform_0, window_bounds = array<i64: 32, 3>}, {pipeline_mode = #tpu.pipeline_mode<synchronous>, transform_indices = @transform_1, window_bounds = array<i64: 3, 16>}, {pipeline_mode = #tpu.pipeline_mode<synchronous>, transform_indices = @transform_2, window_bounds = array<i64: 1, 16>}, {pipeline_mode = #tpu.pipeline_mode<synchronous>, transform_indices = @transform_3, window_bounds = array<i64: 2, 16>}]} {
    %c0_i32 = arith.constant 0 : i32
    %0 = arith.cmpi eq, %arg0, %c0_i32 : i32
    %1 = arith.extui %0 : i1 to i32
    %c0_i32_0 = arith.constant 0 : i32
    %2 = arith.cmpi ne, %1, %c0_i32_0 : i32
    scf.if %2 {
      %cst_11 = arith.constant 0.000000e+00 : f32
      %34 = vector.broadcast %cst_11 : f32 to vector<2x16xf32>
      %c0_12 = arith.constant 0 : index
      %c0_13 = arith.constant 0 : index
      %35 = vector.load %arg4[%c0_12, %c0_13] : memref<2x16xf32, #tpu.memory_space<vmem>>, vector<2x16xf32>
      tpu.vector_store %arg4[%c0_12, %c0_13], %34 {strides = array<i32>} : memref<2x16xf32, #tpu.memory_space<vmem>>, vector<2x16xf32>,
    } else {
    }
    %c0 = arith.constant 0 : index
    %c0_1 = arith.constant 0 : index
    %3 = vector.load %arg1[%c0, %c0_1] : memref<32x3xf32, #tpu.memory_space<vmem>>, vector<32x3xf32>
    %c0_2 = arith.constant 0 : index
    %c0_3 = arith.constant 0 : index
    %4 = vector.load %arg2[%c0_2, %c0_3] : memref<3x16xf32, #tpu.memory_space<vmem>>, vector<3x16xf32>
    %c0_4 = arith.constant 0 : index
    %c0_5 = arith.constant 0 : index
    %5 = vector.load %arg3[%c0_4, %c0_5] : memref<1x16xf32, #tpu.memory_space<vmem>>, vector<1x16xf32>
    %6 = vector.extract_strided_slice %3 {offsets = [0, 0], sizes = [32, 1], strides = [1, 1]} : vector<32x3xf32> to vector<32x1xf32>
    %7 = vector.extract_strided_slice %4 {offsets = [0, 0], sizes = [1, 16], strides = [1, 1]} : vector<3x16xf32> to vector<1x16xf32>
    %8 = vector.broadcast %6 : vector<32x1xf32> to vector<32x16xf32>
    %9 = vector.broadcast %7 : vector<1x16xf32> to vector<32x16xf32>
    %10 = arith.mulf %8, %9 : vector<32x16xf32>
    %11 = vector.broadcast %5 : vector<1x16xf32> to vector<32x16xf32>
    %12 = arith.addf %11, %10 : vector<32x16xf32>
    %13 = vector.extract_strided_slice %3 {offsets = [0, 1], sizes = [32, 1], strides = [1, 1]} : vector<32x3xf32> to vector<32x1xf32>
    %14 = vector.extract_strided_slice %4 {offsets = [1, 0], sizes = [1, 16], strides = [1, 1]} : vector<3x16xf32> to vector<1x16xf32>
    %15 = vector.broadcast %13 : vector<32x1xf32> to vector<32x16xf32>
    %16 = vector.broadcast %14 : vector<1x16xf32> to vector<32x16xf32>
    %17 = arith.mulf %15, %16 : vector<32x16xf32>
    %18 = arith.addf %12, %17 : vector<32x16xf32>
    %19 = vector.extract_strided_slice %3 {offsets = [0, 2], sizes = [32, 1], strides = [1, 1]} : vector<32x3xf32> to vector<32x1xf32>
    %20 = vector.extract_strided_slice %4 {offsets = [2, 0], sizes = [1, 16], strides = [1, 1]} : vector<3x16xf32> to vector<1x16xf32>
    %21 = vector.broadcast %19 : vector<32x1xf32> to vector<32x16xf32>
    %22 = vector.broadcast %20 : vector<1x16xf32> to vector<32x16xf32>
    %23 = arith.mulf %21, %22 : vector<32x16xf32>
    %24 = arith.addf %18, %23 : vector<32x16xf32>
    %c0_6 = arith.constant 0 : index
    %c0_7 = arith.constant 0 : index
    %25 = vector.load %arg4[%c0_6, %c0_7] : memref<2x16xf32, #tpu.memory_space<vmem>>, vector<2x16xf32>
    %cst = arith.constant dense<0.000000e+00> : vector<16xf32>
    %26 = vector.multi_reduction <add>, %24, %cst [0] : vector<32x16xf32> to vector<16xf32>
    %27 = vector.shape_cast %26 : vector<16xf32> to vector<1x16xf32>
    %28 = arith.mulf %24, %24 : vector<32x16xf32>
    %cst_8 = arith.constant dense<0.000000e+00> : vector<16xf32>
    %29 = vector.multi_reduction <add>, %28, %cst_8 [0] : vector<32x16xf32> to vector<16xf32>
    %30 = vector.shape_cast %29 : vector<16xf32> to vector<1x16xf32>
    %31 = tpu.concatenate %27, %30 in 0 : vector<1x16xf32>, vector<1x16xf32> -> vector<2x16xf32>
    %32 = arith.addf %25, %31 : vector<2x16xf32>
    %c0_9 = arith.constant 0 : index
    %c0_10 = arith.constant 0 : index
    %33 = vector.load %arg4[%c0_9, %c0_10] : memref<2x16xf32, #tpu.memory_space<vmem>>, vector<2x16xf32>
    tpu.vector_store %arg4[%c0_9, %c0_10], %32 {strides = array<i32>} : memref<2x16xf32, #tpu.memory_space<vmem>>, vector<2x16xf32>,
    return
  }
  func.func @transform_0(%arg0: i32) -> (i32, i32) {
    %c0_i32 = arith.constant 0 : i32
    %c0_i32_0 = arith.constant 0 : i32
    return %arg0, %c0_i32 : i32, i32
  }
  func.func @transform_1(%arg0: i32) -> (i32, i32) {
    %c0_i32 = arith.constant 0 : i32
    %c0_i32_0 = arith.constant 0 : i32
    %c0_i32_1 = arith.constant 0 : i32
    return %c0_i32, %c0_i32_0 : i32, i32
  }
  func.func @transform_2(%arg0: i32) -> (i32, i32) {
    %c0_i32 = arith.constant 0 : i32
    %c0_i32_0 = arith.constant 0 : i32
    %c0_i32_1 = arith.constant 0 : i32
    return %c0_i32, %c0_i32_0 : i32, i32
  }
  func.func @transform_3(%arg0: i32) -> (i32, i32) {
    %c0_i32 = arith.constant 0 : i32
    %c0_i32_0 = arith.constant 0 : i32
    %c0_i32_1 = arith.constant 0 : i32
    return %c0_i32, %c0_i32_0 : i32, i32
  }
}

</mosaic_0001>

<llo_original>
// kernel: tpu_custom_call.1
$region0: #{tpu_custom_call.1}
  #allocation0 [shape = 'u32[]', space=smem, size = 0x4, offset = 0x4, fixed_abs, tag = 'smem constant byte address 0x4 - core index']
  #allocation1 [shape = 'u32[144,128]{1,0:T(1,128)}', space=vmem, size = 0x12000, scoped, tag = 'internal scratch']
  %s0 = inlined_call_operand.vmem [shape: f32[32,3], index: 0, kind: input, shape index: {}]
  %s1 = inlined_call_operand.vmem [shape: f32[3,16], index: 1, kind: input, shape index: {}]
  %s2 = inlined_call_operand.vmem [shape: f32[1,16], index: 2, kind: input, shape index: {}]
  %s3 = inlined_call_operand.hbm [shape: f32[2,16], index: 3, kind: output, shape index: {}]
  %s4 = sld [smem:[#allocation0]]
  $region26: #{tpu_custom_call.1} parent=0
    _
  %s6 = ssub.s32 1, %s4
  %s7 = scalar_select 0, %s6, %s4
  $region1: #{tpu_custom_call.1} parent=0
    #allocation2 [shape = 'u8[1024]{0}', space=vmem, size = 0x400, scoped, tag = 'output window, operand 0, single buffered']
    #allocation3 [shape = 's32[1]{0}', space=sflag, size = 0x4, scoped, tag = 'scoped memory for tpu_custom_call.1']
    %8 = vsyncpa [#allocation3], 0
    // Predicated region
    $region2: #{tpu_custom_call.1} parent=1 // pred_check
      _
    $region3: #{tpu_custom_call.1} parent=1 // pred_check_branch
      %10 = sbr.rel (0) target = $region5
    $region4: #{tpu_custom_call.1} parent=1 // pred_region
      _
    $region5: #{tpu_custom_call.1} parent=1 // pred_fallthru
      _
    // Predicated region
    $region6: #{tpu_custom_call.1} parent=1 // pred_check
      _
    $region7: #{tpu_custom_call.1} parent=1 // pred_check_branch
      %12 = sbr.rel (0) target = $region9
    $region8: #{tpu_custom_call.1} parent=1 // pred_region
      _
    $region9: #{tpu_custom_call.1} parent=1 // pred_fallthru
      _
    // Predicated region
    $region10: #{tpu_custom_call.1} parent=1 // pred_check
      _
    $region11: #{tpu_custom_call.1} parent=1 // pred_check_branch
      %14 = sbr.rel (0) target = $region13
    $region12: #{tpu_custom_call.1} parent=1 // pred_region
      _
    $region13: #{tpu_custom_call.1} parent=1 // pred_fallthru
      _
    %p15 = scmp.eq.s32.totalorder 0, 0
    // Predicated region
    $region14: #{tpu_custom_call.1} parent=1 // pred_check
      %p16 = pneg %p15
    $region15: #{tpu_custom_call.1} parent=1 // pred_check_branch
      %18 = sbr.rel (%p16) target = $region17
    $region16: #{tpu_custom_call.1} parent=1 // pred_region
      %vm19 = vcmask 123904
      %20 = vst.msk [vmem:[#allocation2] sm:$0x3] %vm19, 0.0
    $region17: #{tpu_custom_call.1} parent=1 // pred_fallthru
      _
    %v21 = vld [vmem:[%s0] sm:$0xff]
    %v22 = vld [vmem:[%s0 + $0x8] sm:$0xff]
    %v23 = vld [vmem:[%s0 + $0x10] sm:$0xff]
    %v24 = vld [vmem:[%s0 + $0x18] sm:$0xff]
    %v25 = vld [vmem:[%s1] sm:$0x7]
    %v26 = vld [vmem:[%s2] sm:$0x1]
    %28 = vset.pattern.permute.xlu0 0
    %29 = vperm.xlu0 %28, %v21
    %v30 = vpop.permute.xlu0 %29
    %33 = vset.pattern.permute.xlu0 0
    %34 = vperm.xlu0 %33, %v22
    %v35 = vpop.permute.xlu0 %34
    %38 = vset.pattern.permute.xlu0 0
    %39 = vperm.xlu0 %38, %v23
    %v40 = vpop.permute.xlu0 %39
    %43 = vset.pattern.permute.xlu0 0
    %44 = vperm.xlu0 %43, %v24
    %v45 = vpop.permute.xlu0 %44
    %v47 = vlaneseq
    %v48 = vshrl.u32 %v47, 7
    %v49 = vsub.s32 0, %v48
    %v50 = vrot.slane %v25, %v49
    %v51 = vmul.f32 %v30, %v50
    %v52 = vmul.f32 %v35, %v50
    %v53 = vmul.f32 %v40, %v50
    %v54 = vmul.f32 %v45, %v50
    %v56 = vlaneseq
    %v57 = vshrl.u32 %v56, 7
    %v58 = vsub.s32 0, %v57
    %v59 = vrot.slane %v26, %v58
    %v61 = vadd.f32 %v59, %v51
    %v62 = vadd.f32 %v59, %v52
    %v63 = vadd.f32 %v59, %v53
    %v64 = vadd.f32 %v59, %v54
    %65 = vset.pattern.permute.xlu0 1
    %66 = vperm.xlu0 %65, %v21
    %v67 = vpop.permute.xlu0 %66
    %69 = vset.pattern.permute.xlu0 1
    %70 = vperm.xlu0 %69, %v22
    %v71 = vpop.permute.xlu0 %70
    %73 = vset.pattern.permute.xlu0 1
    %74 = vperm.xlu0 %73, %v23
    %v75 = vpop.permute.xlu0 %74
    %77 = vset.pattern.permute.xlu0 1
    %78 = vperm.xlu0 %77, %v24
    %v79 = vpop.permute.xlu0 %78
    %v81 = vlaneseq
    %v82 = vshrl.u32 %v81, 7
    %v83 = vsub.s32 1, %v82
    %v84 = vrot.slane %v25, %v83
    %v85 = vmul.f32 %v67, %v84
    %v86 = vmul.f32 %v71, %v84
    %v87 = vmul.f32 %v75, %v84
    %v88 = vmul.f32 %v79, %v84
    %v89 = vadd.f32 %v61, %v85
    %v90 = vadd.f32 %v62, %v86
    %v91 = vadd.f32 %v63, %v87
    %v92 = vadd.f32 %v64, %v88
    %93 = vset.pattern.permute.xlu0 2
    %94 = vperm.xlu0 %93, %v21
    %v95 = vpop.permute.xlu0 %94
    %97 = vset.pattern.permute.xlu0 2
    %98 = vperm.xlu0 %97, %v22
    %v99 = vpop.permute.xlu0 %98
    %101 = vset.pattern.permute.xlu0 2
    %102 = vperm.xlu0 %101, %v23
    %v103 = vpop.permute.xlu0 %102
    %105 = vset.pattern.permute.xlu0 2
    %106 = vperm.xlu0 %105, %v24
    %v107 = vpop.permute.xlu0 %106
    %v109 = vlaneseq
    %v110 = vshrl.u32 %v109, 7
    %v111 = vsub.s32 2, %v110
    %v112 = vrot.slane %v25, %v111
    %v113 = vmul.f32 %v95, %v112
    %v114 = vmul.f32 %v99, %v112
    %v115 = vmul.f32 %v103, %v112
    %v116 = vmul.f32 %v107, %v112
    %v117 = vadd.f32 %v89, %v113
    %v118 = vadd.f32 %v90, %v114
    %v119 = vadd.f32 %v91, %v115
    %v120 = vadd.f32 %v92, %v116
    %v121 = vld [vmem:[#allocation2] sm:$0x3]
    %vm122 = vcmask 130048
    %v123 = vsel %vm122, %v117, 0.0
    %v124 = vsel %vm122, %v118, 0.0
    %v125 = vadd.f32 %v123, %v124
    %v126 = vsel %vm122, %v119, 0.0
    %v127 = vadd.f32 %v125, %v126
    %v128 = vsel %vm122, %v120, 0.0
    %v129 = vadd.f32 %v127, %v128
    %v130 = vrot.slane %v129, 4
    %v131 = vadd.f32 %v129, %v130
    %v132 = vrot.slane %v131, 2
    %v133 = vadd.f32 %v131, %v132
    %v134 = vrot.slane %v133, 1
    %v135 = vadd.f32 %v133, %v134
    %v136 = vmul.f32 %v117, %v117
    %v137 = vmul.f32 %v118, %v118
    %v138 = vmul.f32 %v119, %v119
    %v139 = vmul.f32 %v120, %v120
    %v140 = vsel %vm122, %v136, 0.0
    %v141 = vsel %vm122, %v137, 0.0
    %v142 = vadd.f32 %v140, %v141
    %v143 = vsel %vm122, %v138, 0.0
    %v144 = vadd.f32 %v142, %v143
    %v145 = vsel %vm122, %v139, 0.0
    %v146 = vadd.f32 %v144, %v145
    %v147 = vrot.slane %v146, 4
    %v148 = vadd.f32 %v146, %v147
    %v149 = vrot.slane %v148, 2
    %v150 = vadd.f32 %v148, %v149
    %v151 = vrot.slane %v150, 1
    %v152 = vadd.f32 %v150, %v151
    %vm153 = vcmask 1040384
    %v154 = vsel %vm153, %v135, %v152
    %v155 = vadd.f32 %v121, %v154
    %vm156 = vcmask 123904
    %157 = vst.msk [vmem:[#allocation2] sm:$0x3] %vm156, %v155
    // Predicated region
    $region18: #{tpu_custom_call.1} parent=1 // pred_check
      _
    $region19: #{tpu_custom_call.1} parent=1 // pred_check_branch
      %159 = sbr.rel (0) target = $region21
    $region20: #{tpu_custom_call.1} parent=1 // pred_region
      %s161 = ssub.s32 32, 32
      %162 = vsyncadd [#allocation3], %s161
      %s164 = sshll.u32 [#allocation2], 4
      %s165 = int_to_ptr.vmem [resolvable:$true] %s164
      %167 = dma.vmem_to_hbm [thread:$0]  %s165, 32, %s3, [#allocation3]
    $region21: #{tpu_custom_call.1} parent=1 // pred_fallthru
      _
    // Predicated region
    $region22: #{tpu_custom_call.1} parent=1 // pred_check
      _
    $region23: #{tpu_custom_call.1} parent=1 // pred_check_branch
      %169 = sbr.rel (0) target = $region25
    $region24: #{tpu_custom_call.1} parent=1 // pred_region
      %170 = dma.done [#allocation3], 32
    $region25: #{tpu_custom_call.1} parent=1 // pred_fallthru
      _
    %171 = vsyncpa [#allocation3], 1

</llo_original>
